<compile_context>
chip_gen: v6e
topology: v6e:2x2x1
jax: 0.10.0
libtpu: 0.0.40
codegen_flags: <defaults>
</compile_context>

<pallas_src>
import jax
import jax.numpy as jnp
from jax.experimental import pallas as pl
from jax.experimental.pallas import tpu as pltpu


def _pos_embed_kernel(slab_ref, out_ref):
    # slab_ref: (2F, HW) batch-invariant, lane-dense slab (constant block index
    #           -> stays resident in VMEM across the whole grid).
    # out_ref:  (Bt, 2F, HW) output block for this batch tile.
    bt = out_ref.shape[0]
    slab = slab_ref[...]
    for i in range(bt):            # static, unrolled: one dense full-lane store
        out_ref[i] = slab          # per batch element; no broadcast temporary


def position_embedding_learned(x, row_embed, col_embed, *, target_block_bytes=6 << 20):
    """Pallas equivalent of PositionEmbeddingLearned.forward.

    x:          (B, C, H, W)  -- only the shape matters
    row_embed:  (50, F)
    col_embed:  (50, F)
    returns:    (B, 2*F, H, W)
    """
    B, _, H, W = x.shape
    n_rows, F = row_embed.shape
    n_cols, F_c = col_embed.shape
    assert F == F_c, "row/col embedding feature dims differ"
    assert H <= n_rows, "H exceeds row_embed table size"
    assert W <= n_cols, "W exceeds col_embed table size"

    out_dtype = row_embed.dtype
    HW = H * W
    twoF = 2 * F

    # --- Hoisted slab construction (tiny arrays, done once in the wrapper) ---
    # slab[:F, h*W + w] = col_embed[w],  slab[F:, h*W + w] = row_embed[h]
    colT = jnp.transpose(col_embed[:W]).astype(out_dtype)          # (F, W)
    rowT = jnp.transpose(row_embed[:H]).astype(out_dtype)          # (F, H)
    col_part = jnp.tile(colT, (1, H))                              # (F, HW)
    row_part = jnp.broadcast_to(rowT[:, :, None], (F, H, W)).reshape(F, HW)
    slab = jnp.concatenate([col_part, row_part], axis=0)           # (2F, HW)

    itemsize = jnp.dtype(out_dtype).itemsize
    per_batch_bytes = twoF * HW * itemsize
    slab_bytes = per_batch_bytes

    # --- Batch tiling: large blocks for overhead amortisation, but keep at
    # least 2 grid steps (megacore split on v7x) and an exact divisor of B. ---
    bt = max(1, min(B, target_block_bytes // max(per_batch_bytes, 1)))
    if B >= 2:
        bt = min(bt, B // 2)
    while B % bt:
        bt -= 1
    # Prefer an even number of grid steps so both v7x TensorCores get equal work.
    if bt > 1 and (B // bt) % 2 == 1:
        cand = bt
        while cand > 1 and not (B % cand == 0 and (B // cand) % 2 == 0):
            cand -= 1
        if B % cand == 0 and (B // cand) % 2 == 0:
            bt = cand

    block_bytes = bt * per_batch_bytes
    # VMEM budget: double-buffered output block + (double-buffered) slab input
    # plus headroom; explicit so enlarged blocks don't trip the v5e 16 MiB
    # scoped default or overshoot v7x's 64 MiB physical VMEM.
    vmem_limit = int(min(max(2 * (block_bytes + slab_bytes) + (2 << 20), 16 << 20),
                         48 << 20))

    out_flat = pl.pallas_call(
        _pos_embed_kernel,
        out_shape=jax.ShapeDtypeStruct((B, twoF, HW), out_dtype),
        grid=(B // bt,),
        in_specs=[
            pl.BlockSpec((twoF, HW), lambda b: (0, 0)),    # resident slab input
        ],
        out_specs=pl.BlockSpec((bt, twoF, HW), lambda b: (b, 0, 0)),
        compiler_params=pltpu.CompilerParams(
            dimension_semantics=("parallel",),
            vmem_limit_bytes=vmem_limit,
        ),
    )(slab)

    # Row-major reshape (B, 2F, H*W) -> (B, 2F, H, W): free, no data movement.
    return out_flat.reshape(B, twoF, H, W)


def _reference(x, row_embed, col_embed):
    """Pure-JAX reference reproducing the PyTorch semantics."""
    B, _, H, W = x.shape
    x_emb = col_embed[jnp.arange(W)]                       # (W, F)
    y_emb = row_embed[jnp.arange(H)]                       # (H, F)
    pos = jnp.concatenate(
        [
            jnp.broadcast_to(x_emb[None, :, :], (H, W, x_emb.shape[-1])),
            jnp.broadcast_to(y_emb[:, None, :], (H, W, y_emb.shape[-1])),
        ],
        axis=-1,
    )                                                      # (H, W, 2F)
    pos = jnp.transpose(pos, (2, 0, 1))                    # (2F, H, W)
    return jnp.broadcast_to(pos[None], (B,) + pos.shape)   # (B, 2F, H, W)


if __name__ == "__main__":
    key = jax.random.PRNGKey(0)
    k_row, k_col, k_x = jax.random.split(key, 3)

    num_pos_feats = 32          # small stand-in for the default 256
    B, C, H, W = 2, 4, 16, 16

    # nn.init.uniform_ -> U[0, 1)
    row_embed = jax.random.uniform(k_row, (50, num_pos_feats), dtype=jnp.float32)
    col_embed = jax.random.uniform(k_col, (50, num_pos_feats), dtype=jnp.float32)
    x = jax.random.normal(k_x, (B, C, H, W), dtype=jnp.float32)

    out = position_embedding_learned(x, row_embed, col_embed)
    out = jax.block_until_ready(out)

    ref = _reference(x, row_embed, col_embed)
    assert out.shape == (B, 2 * num_pos_feats, H, W), out.shape
    assert jnp.allclose(out, ref, atol=1e-6), "mismatch vs reference"

    print("KERNEL_OK")
</pallas_src>

<mosaic_0001>
module attributes {stable_mosaic.version = 11 : i64} {
  func.func @_pos_embed_kernel(%arg0: i32, %arg1: memref<64x256xf32, #tpu.memory_space<vmem>>, %arg2: memref<1x64x256xf32, #tpu.memory_space<vmem>>) attributes {dimension_semantics = [#tpu.dimension_semantics<parallel>], iteration_bounds = array<i64: 2>, scalar_prefetch = 0 : i64, scratch_operands = 0 : i64, tpu.core_type = #tpu.core_type<tc>, window_params = [{pipeline_mode = #tpu.pipeline_mode<synchronous>, transform_indices = @transform_0, window_bounds = array<i64: 64, 256>}, {transform_indices = @transform_1, window_bounds = array<i64: 1, 64, 256>}]} {
    %c0 = arith.constant 0 : index
    %c0_0 = arith.constant 0 : index
    %0 = vector.load %arg1[%c0, %c0_0] : memref<64x256xf32, #tpu.memory_space<vmem>>, vector<64x256xf32>
    %c0_1 = arith.constant 0 : index
    %c0_2 = arith.constant 0 : index
    %c0_3 = arith.constant 0 : index
    %1 = vector.load %arg2[%c0_1, %c0_2, %c0_3] : memref<1x64x256xf32, #tpu.memory_space<vmem>>, vector<1x64x256xf32>
    %2 = vector.shape_cast %1 : vector<1x64x256xf32> to vector<64x256xf32>
    %3 = vector.shape_cast %0 : vector<64x256xf32> to vector<1x64x256xf32>
    tpu.vector_store %arg2[%c0_1, %c0_2, %c0_3], %3 {strides = array<i32>} : memref<1x64x256xf32, #tpu.memory_space<vmem>>, vector<1x64x256xf32>,
    return
  }
  func.func @transform_0(%arg0: i32) -> (i32, i32) {
    %c0_i32 = arith.constant 0 : i32
    %c0_i32_0 = arith.constant 0 : i32
    %c0_i32_1 = arith.constant 0 : i32
    return %c0_i32, %c0_i32_0 : i32, i32
  }
  func.func @transform_1(%arg0: i32) -> (i32, i32, i32) {
    %c0_i32 = arith.constant 0 : i32
    %c0_i32_0 = arith.constant 0 : i32
    %c0_i32_1 = arith.constant 0 : i32
    return %arg0, %c0_i32, %c0_i32_0 : i32, i32, i32
  }
}

</mosaic_0001>

<llo_original>
// kernel: tpu_custom_call.1
$region0: #{tpu_custom_call.1}
  #allocation0 [shape = 'u32[]', space=smem, size = 0x4, offset = 0x4, fixed_abs, tag = 'smem constant byte address 0x4 - core index']
  #allocation1 [shape = 'u32[144,128]{1,0:T(1,128)}', space=vmem, size = 0x12000, scoped, tag = 'internal scratch']
  %s0 = inlined_call_operand.hbm [shape: f32[64,256], index: 0, kind: input, shape index: {}]
  %s1 = inlined_call_operand.hbm [shape: f32[2,64,256], index: 1, kind: output, shape index: {}]
  %s2 = sld [smem:[#allocation0]]
  $region41: #{tpu_custom_call.1} parent=0
    _
  %s4 = ssub.s32 1, %s2
  %s5 = scalar_select 0, %s4, %s2
  $region1: #{tpu_custom_call.1} parent=0
    #allocation2 [shape = 'u8[65536]{0}', space=vmem, size = 0x10000, scoped, tag = 'input window, operand 0, single buffered']
    #allocation3 [shape = 's32[2]{0}', space=sflag, size = 0x8, scoped, tag = 'scoped memory for tpu_custom_call.1']
    #allocation4 [shape = 's32[2]{0}', space=sflag, size = 0x8, scoped, tag = 'scoped memory for tpu_custom_call.1']
    #allocation5 [shape = 'u8[131072]{0}', space=vmem, size = 0x20000, scoped, tag = 'output window, operand 0']
    %6 = vsyncpa [#allocation3], 0
    %7 = vsyncpa [#allocation4], 0
    %s8 = scalar_lea.sflag [#allocation4], 1
    %9 = vsyncpa %s8, 0
    loop: start=0, step=1, limit=4
    $region2: #{tpu_custom_call.1} parent=1 // loop_pre_header
      _
    $region3: #{tpu_custom_call.1} parent=1 // loop_header
      %s11 = sphi 0, %s15
      %p12 = scmp.ge.s32.totalorder %s11, 4
      %s19 = sphi 0, %s19
      %s21 = sphi 0, %s19
      %s22 = sphi 0, %s21
      %s36 = sphi 0, %s22
      %s42 = sphi 0, %s44
      %s45 = sphi 0, %s42
      %s46 = sphi 0, %s45
      %s62 = sphi 0, %s46
    $region4: #{tpu_custom_call.1} parent=1 // loop_header_branch
      %14 = sbr.rel (%p12) target = $region8
    $region5: #{tpu_custom_call.1} parent=1 // loop_body
      %s16 = ssub.s32 %s11, 1
      %s17 = ssub.s32 %s11, 2
      %s18 = sadd.s32 %s11, 1
      %s20 = sadd.s32 %s19, 1
      %p23 = scmp.eq.s32.totalorder %s11, 1
      %p24 = scmp.ne.s32.totalorder %s19, %s21
      %p25 = scmp.eq.s32.totalorder %s11, 0
      %p26 = por %p24, %p25
      %p27 = scmp.ne.s32.totalorder %s19, %s21
      %p28 = scmp.eq.s32.totalorder %s16, 1
      %p29 = por %p27, %p28
      %p30 = scmp.ne.s32.totalorder %s21, %s22
      %p31 = scmp.eq.s32.totalorder %s16, 0
      %p32 = por %p30, %p31
      %p33 = scmp.ne.s32.totalorder %s21, %s22
      %p34 = scmp.eq.s32.totalorder %s17, 1
      %p35 = por %p33, %p34
      %p37 = scmp.ne.s32.totalorder %s22, %s36
      %p38 = scmp.eq.s32.totalorder %s17, 0
      %p39 = por %p37, %p38
      %s40 = ssub.s32 %s11, %s18
      %p41 = scmp.eq.s32.totalorder %s40, 0
      %s43 = sadd.s32 %s42, 1
      %s44 = scalar_select %p41, %s42, %s43
      %p47 = pneg %p41
      %p48 = scmp.eq.s32.totalorder %s11, 1
      %p49 = por %p47, %p48
      %p50 = scmp.ne.s32.totalorder %s42, %s45
      %p51 = scmp.eq.s32.totalorder %s11, 0
      %p52 = por %p50, %p51
      %p53 = scmp.ne.s32.totalorder %s42, %s45
      %p54 = scmp.eq.s32.totalorder %s16, 1
      %p55 = por %p53, %p54
      %p56 = scmp.ne.s32.totalorder %s45, %s46
      %p57 = scmp.eq.s32.totalorder %s16, 0
      %p58 = por %p56, %p57
      %p59 = scmp.ne.s32.totalorder %s45, %s46
      %p60 = scmp.eq.s32.totalorder %s17, 1
      %p61 = por %p59, %p60
      %p63 = scmp.ne.s32.totalorder %s46, %s62
      %p64 = scmp.eq.s32.totalorder %s17, 0
      %p65 = por %p63, %p64
      %p66 = scmp.le.s32.totalorder 1, %s11
      %p67 = scmp.lt.s32.totalorder %s11, 3
      %p68 = pnand %p66, %p67
      %p69 = pneg %p68
      // Predicated region
      $region9: #{tpu_custom_call.1} parent=5 // pred_check
        _
      $region10: #{tpu_custom_call.1} parent=5 // pred_check_branch
        %71 = sbr.rel (%p68) target = $region12
      $region11: #{tpu_custom_call.1} parent=5 // pred_region
        %s72 = ssub.s32 %s11, 1
        // Predicated region
        $region13: #{tpu_custom_call.1} parent=11 // pred_check
          %p73 = pneg %p32
        $region14: #{tpu_custom_call.1} parent=11 // pred_check_branch
          %75 = sbr.rel (%p73) target = $region16
        $region15: #{tpu_custom_call.1} parent=11 // pred_region
          %s77 = ssub.s32 2048, 2048
          %78 = vsyncadd [#allocation3], %s77
          %s79 = sshll.u32 [#allocation2], 4
          %s80 = int_to_ptr.vmem [resolvable:$true] %s79
          %85 = dma.hbm_to_vmem [thread:$0]  %s0, 2048, %s80, [#allocation3], 256, 256, 16
        $region16: #{tpu_custom_call.1} parent=11 // pred_fallthru
          _
      $region12: #{tpu_custom_call.1} parent=5 // pred_fallthru
        _
      %p86 = scmp.lt.s32.totalorder %s11, 2
      // Predicated region
      $region17: #{tpu_custom_call.1} parent=5 // pred_check
        %p87 = pneg %p86
      $region18: #{tpu_custom_call.1} parent=5 // pred_check_branch
        %89 = sbr.rel (%p87) target = $region20
      $region19: #{tpu_custom_call.1} parent=5 // pred_region
        _
      $region20: #{tpu_custom_call.1} parent=5 // pred_fallthru
        _
      %p90 = scmp.le.s32.totalorder 1, %s11
      %p91 = scmp.lt.s32.totalorder %s11, 3
      %p92 = pnand %p90, %p91
      %p93 = pneg %p92
      // Predicated region
      $region21: #{tpu_custom_call.1} parent=5 // pred_check
        _
      $region22: #{tpu_custom_call.1} parent=5 // pred_check_branch
        %95 = sbr.rel (%p92) target = $region24
      $region23: #{tpu_custom_call.1} parent=5 // pred_region
        %s96 = ssub.s32 %s11, 1
        // Predicated region
        $region25: #{tpu_custom_call.1} parent=23 // pred_check
          %p97 = pneg %p32
        $region26: #{tpu_custom_call.1} parent=23 // pred_check_branch
          %99 = sbr.rel (%p97) target = $region28
        $region27: #{tpu_custom_call.1} parent=23 // pred_region
          %100 = dma.done [#allocation3], 2048
        $region28: #{tpu_custom_call.1} parent=23 // pred_fallthru
          _
        %p101 = pneg %p32
        %p102 = pneg %p29
        %p103 = pneg %p58
        %p104 = pneg %p55
        %s105 = sand.u32 %s45, 1
        %s106 = scalar_lea.sflag [#allocation4], %s105
        %s107 = sand.u32 %s45, 1
        %s108 = smul.addr %s107, 128
        %s109 = scalar_lea.vmem [#allocation5], %s108
        %v110 = vld [vmem:[#allocation2] sm:$0xff]
        %v111 = vld [vmem:[#allocation2 + $0x8] sm:$0xff]
        %v112 = vld [vmem:[#allocation2 + $0x10] sm:$0xff]
        %v113 = vld [vmem:[#allocation2 + $0x18] sm:$0xff]
        %v114 = vld [vmem:[#allocation2 + $0x20] sm:$0xff]
        %v115 = vld [vmem:[#allocation2 + $0x28] sm:$0xff]
        %v116 = vld [vmem:[#allocation2 + $0x30] sm:$0xff]
        %v117 = vld [vmem:[#allocation2 + $0x38] sm:$0xff]
        %v118 = vld [vmem:[#allocation2 + $0x40] sm:$0xff]
        %v119 = vld [vmem:[#allocation2 + $0x48] sm:$0xff]
        %v120 = vld [vmem:[#allocation2 + $0x50] sm:$0xff]
        %v121 = vld [vmem:[#allocation2 + $0x58] sm:$0xff]
        %v122 = vld [vmem:[#allocation2 + $0x60] sm:$0xff]
        %v123 = vld [vmem:[#allocation2 + $0x68] sm:$0xff]
        %v124 = vld [vmem:[#allocation2 + $0x70] sm:$0xff]
        %v125 = vld [vmem:[#allocation2 + $0x78] sm:$0xff]
        %126 = vst [vmem:[%s109] sm:$0xff] %v110
        %127 = vst [vmem:[%s109 + $0x8] sm:$0xff] %v111
        %128 = vst [vmem:[%s109 + $0x10] sm:$0xff] %v112
        %129 = vst [vmem:[%s109 + $0x18] sm:$0xff] %v113
        %130 = vst [vmem:[%s109 + $0x20] sm:$0xff] %v114
        %131 = vst [vmem:[%s109 + $0x28] sm:$0xff] %v115
        %132 = vst [vmem:[%s109 + $0x30] sm:$0xff] %v116
        %133 = vst [vmem:[%s109 + $0x38] sm:$0xff] %v117
        %134 = vst [vmem:[%s109 + $0x40] sm:$0xff] %v118
        %135 = vst [vmem:[%s109 + $0x48] sm:$0xff] %v119
        %136 = vst [vmem:[%s109 + $0x50] sm:$0xff] %v120
        %137 = vst [vmem:[%s109 + $0x58] sm:$0xff] %v121
        %138 = vst [vmem:[%s109 + $0x60] sm:$0xff] %v122
        %139 = vst [vmem:[%s109 + $0x68] sm:$0xff] %v123
        %140 = vst [vmem:[%s109 + $0x70] sm:$0xff] %v124
        %141 = vst [vmem:[%s109 + $0x78] sm:$0xff] %v125
        %s142 = sand.u32 %s45, 1
        %s143 = scalar_lea.sflag [#allocation4], %s142
        %s144 = sand.u32 %s45, 1
        %s145 = smul.addr %s144, 128
        %s146 = scalar_lea.vmem [#allocation5], %s145
        // Predicated region
        $region29: #{tpu_custom_call.1} parent=23 // pred_check
          %p147 = pneg %p55
        $region30: #{tpu_custom_call.1} parent=23 // pred_check_branch
          %149 = sbr.rel (%p147) target = $region32
        $region31: #{tpu_custom_call.1} parent=23 // pred_region
          %s151 = ssub.s32 2048, 2048
          %152 = vsyncadd %s143, %s151
          %s153 = smul.addr %s16, 16
          %s154 = smul.addr %s153, 128
          %s155 = scalar_lea.hbm %s1, %s154
          %s156 = sshll.u32 %s146, 4
          %s157 = int_to_ptr.vmem [resolvable:$true] %s156
          %162 = dma.vmem_to_hbm [thread:$0]  %s157, 2048, %s155, %s143, 256, 256, 16
        $region32: #{tpu_custom_call.1} parent=23 // pred_fallthru
          _
      $region24: #{tpu_custom_call.1} parent=5 // pred_fallthru
        _
      %p163 = scmp.le.s32.totalorder 2, %s11
      // Predicated region
      $region33: #{tpu_custom_call.1} parent=5 // pred_check
        %p164 = pneg %p163
      $region34: #{tpu_custom_call.1} parent=5 // pred_check_branch
        %166 = sbr.rel (%p164) target = $region36
      $region35: #{tpu_custom_call.1} parent=5 // pred_region
        %s167 = ssub.s32 %s11, 2
        // Predicated region
        $region37: #{tpu_custom_call.1} parent=35 // pred_check
          %p168 = pneg %p61
        $region38: #{tpu_custom_call.1} parent=35 // pred_check_branch
          %170 = sbr.rel (%p168) target = $region40
        $region39: #{tpu_custom_call.1} parent=35 // pred_region
          %s171 = sand.u32 %s46, 1
          %s172 = scalar_lea.sflag [#allocation4], %s171
          %s173 = sand.u32 %s46, 1
          %s174 = smul.addr %s173, 128
          %s175 = scalar_lea.vmem [#allocation5], %s174
          %176 = dma.done %s172, 2048
        $region40: #{tpu_custom_call.1} parent=35 // pred_fallthru
          _
      $region36: #{tpu_custom_call.1} parent=5 // pred_fallthru
        _
    $region6: #{tpu_custom_call.1} parent=1 // loop_footer
      %s15 = sadd.s32 1, %s11
    $region7: #{tpu_custom_call.1} parent=1 // loop_footer_branch
      %10 = sbr.rel target = $region3
    $region8: #{tpu_custom_call.1} parent=1 // loop_exit
      _
    %177 = vsyncpa [#allocation3], 1
    %s178 = scalar_lea.sflag [#allocation3], 1
    %179 = vsyncpa %s178, 1
    %180 = vsyncpa [#allocation4], 1
    %s181 = scalar_lea.sflag [#allocation4], 1
    %182 = vsyncpa %s181, 1

</llo_original>
